<compile_context>
chip_gen: v5e
topology: v5e:2x2
jax: 0.10.0
libtpu: 0.0.40
codegen_flags: <defaults>
</compile_context>

<pallas_src>
import functools
import math

import jax
import jax.numpy as jnp
from jax.experimental import pallas as pl
from jax.experimental.pallas import tpu as pltpu


def _round_up(a, m):
    return (a + m - 1) // m * m


def _conv1d_taps_kernel(x_ref, xh_ref, w_ref, b_ref, o_ref, x_scr, *, dilation):
    """One (batch, L-tile, C_out-tile) grid step, native NLC layout.

    x_ref : (1, TL,  C_in)   current input rows (padded coordinates)
    xh_ref: (1, TLH, C_in)   halo rows (start of the next tile)
    w_ref : (K, C_in, TCO)   per-tap weight slices (resident across L tiles)
    b_ref : (1, TCO)         bias (f32)
    o_ref : (1, TL, TCO)     output rows, lane axis = C_out tile
    x_scr : (TL+TLH, C_in)   persistent VMEM scratch: extended input window
    """
    TL = o_ref.shape[1]
    K = w_ref.shape[0]

    # Assemble the extended window once per (b, l); C_out tiles reuse it.
    @pl.when(pl.program_id(2) == 0)
    def _fill():
        x_scr[:TL, :] = x_ref[0]
        x_scr[TL:, :] = xh_ref[0]

    # K accumulating MXU dots on static row windows -- no concat temps.
    acc = jnp.dot(x_scr[0:TL, :], w_ref[0], preferred_element_type=jnp.float32)
    for k in range(1, K):
        s = k * dilation
        acc = acc + jnp.dot(x_scr[s:s + TL, :], w_ref[k],
                            preferred_element_type=jnp.float32)
    o_ref[0] = (acc + b_ref[...]).astype(o_ref.dtype)


def _conv1d_pointwise_kernel(x_ref, w_ref, b_ref, o_ref):
    """K == 1 fast path: no halo operand, no scratch."""
    acc = jnp.dot(x_ref[0], w_ref[0], preferred_element_type=jnp.float32)
    o_ref[0] = (acc + b_ref[...]).astype(o_ref.dtype)


def conv1d_layer(x, weight, bias, *, padding=0, dilation=1,
                 max_tile_l=2048, vmem_budget_bytes=20 * 1024 * 1024,
                 compute_dtype=None):
    """x: (B, L, C_in), weight: (C_out, C_in, K) [PyTorch OIK], bias: (C_out,).

    Returns (B, L_out, C_out), matching Conv1dLayer.forward (stride 1).
    compute_dtype=jnp.bfloat16 is an opt-in faster path (changes numerics).
    """
    B, L, C_in = x.shape
    C_out, C_in_w, K = weight.shape
    assert C_in_w == C_in
    halo = dilation * (K - 1)
    L_out = L + 2 * padding - halo
    assert L_out > 0, "conv output length must be positive"

    in_dtype = compute_dtype if compute_dtype is not None else x.dtype
    in_item = jnp.dtype(in_dtype).itemsize
    out_item = jnp.dtype(x.dtype).itemsize

    # C_out tile (output lane axis): full width unless large and 256-divisible.
    TCO = 256 if (C_out > 256 and C_out % 256 == 0) else C_out
    n_co = C_out // TCO

    # Halo width, sublane-aligned (8) in the NLC layout.
    TLH = _round_up(halo, 8) if halo > 0 else 0

    # L tile from an explicit VMEM budget:
    #   double-buffered x/out blocks + scratch + f32 accumulator (per L row)
    #   plus halo buffers + resident weight (constant).
    per_tl = in_item * 3 * C_in + out_item * 2 * TCO + 4 * TCO + 4 * C_in
    const = in_item * (3 * TLH * C_in + 2 * K * C_in * TCO) + (64 << 10)
    tl_fit = max((vmem_budget_bytes - const) // per_tl, 8)
    TL = int(min(tl_fit, max_tile_l, _round_up(L_out, 8)))
    TL = _round_up(TL, TLH if TLH else 8)       # keep TL % TLH == 0 (and % 8)
    n_l = pl.cdiv(L_out, TL)
    halo_mult = TL // TLH if TLH else 0
    est_bytes = const + per_tl * TL

    # Single contiguous copy of x: folds the conv zero padding and the
    # tile/halo round-up along L.  Layout stays NLC -- no transpose pass.
    L_xpad = n_l * TL + TLH
    x_p = jnp.pad(x, ((0, 0), (padding, L_xpad - L - padding), (0, 0)))
    w_t = jnp.transpose(weight, (2, 1, 0))      # (K, C_in, C_out), tap-major
    b_t = bias.reshape(1, C_out).astype(jnp.float32)
    if compute_dtype is not None:
        x_p = x_p.astype(compute_dtype)         # fuses with the pad
        w_t = w_t.astype(compute_dtype)

    grid = (B, n_l, n_co)
    out_spec = pl.BlockSpec((1, TL, TCO), lambda b, l, co: (b, l, co))

    if K > 1:
        kernel = functools.partial(_conv1d_taps_kernel, dilation=dilation)
        in_specs = [
            pl.BlockSpec((1, TL, C_in), lambda b, l, co: (b, l, 0)),
            pl.BlockSpec((1, TLH, C_in),
                         lambda b, l, co: (b, (l + 1) * halo_mult, 0)),
            pl.BlockSpec((K, C_in, TCO), lambda b, l, co: (0, 0, co)),
            pl.BlockSpec((1, TCO), lambda b, l, co: (0, co)),
        ]
        operands = (x_p, x_p, w_t, b_t)
        scratch_shapes = [pltpu.VMEM((TL + TLH, C_in), x_p.dtype)]
    else:
        kernel = _conv1d_pointwise_kernel
        in_specs = [
            pl.BlockSpec((1, TL, C_in), lambda b, l, co: (b, l, 0)),
            pl.BlockSpec((K, C_in, TCO), lambda b, l, co: (0, 0, co)),
            pl.BlockSpec((1, TCO), lambda b, l, co: (0, co)),
        ]
        operands = (x_p, w_t, b_t)
        scratch_shapes = []

    return pl.pallas_call(
        kernel,
        out_shape=jax.ShapeDtypeStruct((B, L_out, C_out), x.dtype),
        grid_spec=pltpu.PrefetchScalarGridSpec(
            num_scalar_prefetch=0,
            grid=grid,
            in_specs=in_specs,
            out_specs=out_spec,
            scratch_shapes=scratch_shapes,
        ),
        compiler_params=pltpu.CompilerParams(
            dimension_semantics=("parallel", "parallel", "arbitrary"),
            vmem_limit_bytes=max(32 * 1024 * 1024, int(1.4 * est_bytes)),
        ),
    )(*operands)


def _reference_conv1d(x, weight, bias, *, padding, dilation):
    # Pure-JAX reference mirroring nn.Conv1d applied to the permuted input.
    x_ncl = jnp.transpose(x, (0, 2, 1))  # (B, C_in, L)
    y = jax.lax.conv_general_dilated(
        x_ncl, weight,
        window_strides=(1,),
        padding=[(padding, padding)],
        rhs_dilation=(dilation,),
        dimension_numbers=("NCH", "OIH", "NCH"),
    )
    y = y + bias[None, :, None]
    return jnp.transpose(y, (0, 2, 1))   # (B, L_out, C_out)


if __name__ == "__main__":
    key = jax.random.PRNGKey(0)

    def _quantize(a, scale=16.0):
        # Snap test data to a 1/16 grid: every TPU matmul-precision mode
        # (bf16 single-pass, 3-pass, full f32) is then exact, so the parity
        # check is independent of the default matmul precision.
        return jnp.round(a * scale) / scale

    def _make_case(k, B, L, C_in, C_out, K):
        kx, kw, kb = jax.random.split(k, 3)
        fan_in = C_in * K
        w_std = math.sqrt(2.0) / math.sqrt(fan_in)        # kaiming_normal_
        weight = _quantize(w_std * jax.random.normal(
            kw, (C_out, C_in, K), dtype=jnp.float32))
        b_bound = 1.0 / math.sqrt(fan_in)                 # nn.Conv1d default bias
        bias = jax.random.uniform(kb, (C_out,), minval=-b_bound,
                                  maxval=b_bound, dtype=jnp.float32)
        x = _quantize(jax.random.normal(kx, (B, L, C_in), dtype=jnp.float32))
        return x, weight, bias

    k1, k2 = jax.random.split(key)

    # Case 1: shapes implied by the module forward (B=2, C 4->8, L=16, K=3,
    # "same" padding): single L tile.
    x, w, b = _make_case(k1, B=2, L=16, C_in=4, C_out=8, K=3)
    out = conv1d_layer(x, w, b, padding=1, dilation=1)
    out = jax.block_until_ready(out)
    ref = _reference_conv1d(x, w, b, padding=1, dilation=1)
    assert out.shape == ref.shape == (2, 16, 8)
    assert jnp.allclose(out, ref, atol=1e-5, rtol=1e-5), \
        float(jnp.max(jnp.abs(out - ref)))

    # Case 2: multi-L-tile path with a rounded halo (dilation*(K-1)=10 ->
    # TLH=16, TL=32, 3 tiles, partial last output block): exercises the halo
    # index_map, the scratch seam, and OOB-discarded output rows.
    x2, w2, b2 = _make_case(k2, B=1, L=80, C_in=8, C_out=16, K=3)
    out2 = conv1d_layer(x2, w2, b2, padding=5, dilation=5, max_tile_l=32)
    out2 = jax.block_until_ready(out2)
    ref2 = _reference_conv1d(x2, w2, b2, padding=5, dilation=5)
    assert out2.shape == ref2.shape == (1, 80, 16)
    assert jnp.allclose(out2, ref2, atol=1e-5, rtol=1e-5), \
        float(jnp.max(jnp.abs(out2 - ref2)))

    print("KERNEL_OK")
</pallas_src>

<mosaic_0001>
module attributes {stable_mosaic.version = 11 : i64} {
  func.func @_conv1d_taps_kernel(%arg0: i32, %arg1: i32, %arg2: i32, %arg3: memref<1x16x4xf32, #tpu.memory_space<vmem>>, %arg4: memref<1x8x4xf32, #tpu.memory_space<vmem>>, %arg5: memref<3x4x8xf32, #tpu.memory_space<vmem>>, %arg6: memref<1x8xf32, #tpu.memory_space<vmem>>, %arg7: memref<1x16x8xf32, #tpu.memory_space<vmem>>, %arg8: memref<24x4xf32, #tpu.memory_space<vmem>>) attributes {dimension_semantics = [#tpu.dimension_semantics<parallel>, #tpu.dimension_semantics<parallel>, #tpu.dimension_semantics<arbitrary>], iteration_bounds = array<i64: 2, 1, 1>, scalar_prefetch = 0 : i64, scratch_operands = 1 : i64, tpu.core_type = #tpu.core_type<tc>, window_params = [{transform_indices = @transform_0, window_bounds = array<i64: 1, 16, 4>}, {transform_indices = @transform_1, window_bounds = array<i64: 1, 8, 4>}, {transform_indices = @transform_2, window_bounds = array<i64: 3, 4, 8>}, {transform_indices = @transform_3, window_bounds = array<i64: 1, 8>}, {transform_indices = @transform_4, window_bounds = array<i64: 1, 16, 8>}]} {
    %c0_i32 = arith.constant 0 : i32
    %0 = arith.cmpi eq, %arg2, %c0_i32 : i32
    %1 = arith.extui %0 : i1 to i32
    %c0_i32_0 = arith.constant 0 : i32
    %2 = arith.cmpi ne, %1, %c0_i32_0 : i32
    scf.if %2 {
      %c0_20 = arith.constant 0 : index
      %c0_21 = arith.constant 0 : index
      %c0_22 = arith.constant 0 : index
      %23 = vector.load %arg3[%c0_20, %c0_21, %c0_22] : memref<1x16x4xf32, #tpu.memory_space<vmem>>, vector<1x16x4xf32>
      %24 = vector.shape_cast %23 : vector<1x16x4xf32> to vector<16x4xf32>
      %c0_23 = arith.constant 0 : index
      %c0_24 = arith.constant 0 : index
      %25 = vector.load %arg8[%c0_23, %c0_24] : memref<24x4xf32, #tpu.memory_space<vmem>>, vector<16x4xf32>
      tpu.vector_store %arg8[%c0_23, %c0_24], %24 {strides = array<i32>} : memref<24x4xf32, #tpu.memory_space<vmem>>, vector<16x4xf32>,
      %c0_25 = arith.constant 0 : index
      %c0_26 = arith.constant 0 : index
      %c0_27 = arith.constant 0 : index
      %26 = vector.load %arg4[%c0_25, %c0_26, %c0_27] : memref<1x8x4xf32, #tpu.memory_space<vmem>>, vector<1x8x4xf32>
      %27 = vector.shape_cast %26 : vector<1x8x4xf32> to vector<8x4xf32>
      %c16 = arith.constant 16 : index
      %c0_28 = arith.constant 0 : index
      %28 = vector.load %arg8[%c16, %c0_28] : memref<24x4xf32, #tpu.memory_space<vmem>>, vector<8x4xf32>
      tpu.vector_store %arg8[%c16, %c0_28], %27 {strides = array<i32>} : memref<24x4xf32, #tpu.memory_space<vmem>>, vector<8x4xf32>,
    } else {
    }
    %c0 = arith.constant 0 : index
    %c0_1 = arith.constant 0 : index
    %3 = vector.load %arg8[%c0, %c0_1] : memref<24x4xf32, #tpu.memory_space<vmem>>, vector<16x4xf32>
    %c0_2 = arith.constant 0 : index
    %c0_3 = arith.constant 0 : index
    %c0_4 = arith.constant 0 : index
    %4 = vector.load %arg5[%c0_2, %c0_3, %c0_4] : memref<3x4x8xf32, #tpu.memory_space<vmem>>, vector<1x4x8xf32>
    %5 = vector.shape_cast %4 : vector<1x4x8xf32> to vector<4x8xf32>
    %cst = arith.constant dense<0.000000e+00> : vector<16x8xf32>
    %6 = tpu.matmul %3, %5, %cst {dimension_numbers = #tpu.dot_dimension_numbers<[1], [0], [0], [1], [0, 0, 1, 1], [], []>} : vector<16x4xf32>, vector<4x8xf32>, vector<16x8xf32> -> vector<16x8xf32>
    %c1 = arith.constant 1 : index
    %c0_5 = arith.constant 0 : index
    %7 = vector.load %arg8[%c1, %c0_5] : memref<24x4xf32, #tpu.memory_space<vmem>>, vector<16x4xf32>
    %c1_6 = arith.constant 1 : index
    %c0_7 = arith.constant 0 : index
    %c0_8 = arith.constant 0 : index
    %8 = vector.load %arg5[%c1_6, %c0_7, %c0_8] : memref<3x4x8xf32, #tpu.memory_space<vmem>>, vector<1x4x8xf32>
    %9 = vector.shape_cast %8 : vector<1x4x8xf32> to vector<4x8xf32>
    %cst_9 = arith.constant dense<0.000000e+00> : vector<16x8xf32>
    %10 = tpu.matmul %7, %9, %cst_9 {dimension_numbers = #tpu.dot_dimension_numbers<[1], [0], [0], [1], [0, 0, 1, 1], [], []>} : vector<16x4xf32>, vector<4x8xf32>, vector<16x8xf32> -> vector<16x8xf32>
    %11 = arith.addf %6, %10 : vector<16x8xf32>
    %c2 = arith.constant 2 : index
    %c0_10 = arith.constant 0 : index
    %12 = vector.load %arg8[%c2, %c0_10] : memref<24x4xf32, #tpu.memory_space<vmem>>, vector<16x4xf32>
    %c2_11 = arith.constant 2 : index
    %c0_12 = arith.constant 0 : index
    %c0_13 = arith.constant 0 : index
    %13 = vector.load %arg5[%c2_11, %c0_12, %c0_13] : memref<3x4x8xf32, #tpu.memory_space<vmem>>, vector<1x4x8xf32>
    %14 = vector.shape_cast %13 : vector<1x4x8xf32> to vector<4x8xf32>
    %cst_14 = arith.constant dense<0.000000e+00> : vector<16x8xf32>
    %15 = tpu.matmul %12, %14, %cst_14 {dimension_numbers = #tpu.dot_dimension_numbers<[1], [0], [0], [1], [0, 0, 1, 1], [], []>} : vector<16x4xf32>, vector<4x8xf32>, vector<16x8xf32> -> vector<16x8xf32>
    %16 = arith.addf %11, %15 : vector<16x8xf32>
    %c0_15 = arith.constant 0 : index
    %c0_16 = arith.constant 0 : index
    %17 = vector.load %arg6[%c0_15, %c0_16] : memref<1x8xf32, #tpu.memory_space<vmem>>, vector<1x8xf32>
    %18 = vector.broadcast %17 : vector<1x8xf32> to vector<16x8xf32>
    %19 = arith.addf %16, %18 : vector<16x8xf32>
    %c0_17 = arith.constant 0 : index
    %c0_18 = arith.constant 0 : index
    %c0_19 = arith.constant 0 : index
    %20 = vector.load %arg7[%c0_17, %c0_18, %c0_19] : memref<1x16x8xf32, #tpu.memory_space<vmem>>, vector<1x16x8xf32>
    %21 = vector.shape_cast %20 : vector<1x16x8xf32> to vector<16x8xf32>
    %22 = vector.shape_cast %19 : vector<16x8xf32> to vector<1x16x8xf32>
    tpu.vector_store %arg7[%c0_17, %c0_18, %c0_19], %22 {strides = array<i32>} : memref<1x16x8xf32, #tpu.memory_space<vmem>>, vector<1x16x8xf32>,
    return
  }
  func.func @transform_0(%arg0: i32, %arg1: i32, %arg2: i32) -> (i32, i32, i32) {
    %c0_i32 = arith.constant 0 : i32
    %c0_i32_0 = arith.constant 0 : i32
    return %arg0, %arg1, %c0_i32 : i32, i32, i32
  }
  func.func @transform_1(%arg0: i32, %arg1: i32, %arg2: i32) -> (i32, i32, i32) {
    %c1_i32 = arith.constant 1 : i32
    %0 = arith.addi %arg1, %c1_i32 : i32
    %c2_i32 = arith.constant 2 : i32
    %1 = arith.muli %0, %c2_i32 : i32
    %c0_i32 = arith.constant 0 : i32
    %c0_i32_0 = arith.constant 0 : i32
    return %arg0, %1, %c0_i32 : i32, i32, i32
  }
  func.func @transform_2(%arg0: i32, %arg1: i32, %arg2: i32) -> (i32, i32, i32) {
    %c0_i32 = arith.constant 0 : i32
    %c0_i32_0 = arith.constant 0 : i32
    %c0_i32_1 = arith.constant 0 : i32
    return %c0_i32, %c0_i32_0, %arg2 : i32, i32, i32
  }
  func.func @transform_3(%arg0: i32, %arg1: i32, %arg2: i32) -> (i32, i32) {
    %c0_i32 = arith.constant 0 : i32
    %c0_i32_0 = arith.constant 0 : i32
    return %c0_i32, %arg2 : i32, i32
  }
  func.func @transform_4(%arg0: i32, %arg1: i32, %arg2: i32) -> (i32, i32, i32) {
    %c0_i32 = arith.constant 0 : i32
    return %arg0, %arg1, %arg2 : i32, i32, i32
  }
}

</mosaic_0001>

<llo_original>
// kernel: tpu_custom_call.1
$region0: #{tpu_custom_call.1}
  #allocation0 [shape = 'u32[]', space=smem, size = 0x4, offset = 0x4, fixed_abs, tag = 'smem constant byte address 0x4 - core index']
  #allocation1 [shape = 'u32[72,128]{1,0:T(1,128)}', space=vmem, size = 0x9000, scoped, tag = 'internal scratch']
  #allocation2 [shape = 'f32[24,4]{1,0:T(8,128)}', space=vmem, size = 0x3000, scoped, tag = 'scratch operand']
  %s0 = inlined_call_operand.vmem [shape: f32[2,24,4], index: 0, kind: input, shape index: {}]
  %s1 = inlined_call_operand.vmem [shape: f32[2,24,4], index: 1, kind: input, shape index: {}]
  %s2 = inlined_call_operand.vmem [shape: f32[3,4,8], index: 2, kind: input, shape index: {}]
  %s3 = inlined_call_operand.vmem [shape: f32[1,8], index: 3, kind: input, shape index: {}]
  %s4 = inlined_call_operand.vmem [shape: f32[2,16,8], index: 4, kind: output, shape index: {}]
  %s5 = sld [smem:[#allocation0]]
  $region53: #{tpu_custom_call.1} parent=0
    _
  %s7 = ssub.s32 1, %s5
  %s8 = scalar_select 0, %s7, %s5
  loop: start=0, step=1, limit=4
  $region2: #{tpu_custom_call.1} parent=0 // loop_pre_header
    _
  $region3: #{tpu_custom_call.1} parent=0 // loop_header
    %s10 = sphi 0, %s14
    %p11 = scmp.ge.s32.totalorder %s10, 4
    %s17 = sphi 0, %s36
    %s18 = sphi 0, %s32
    %s19 = sphi 0, %s28
    %s20 = sphi 0, %s17
    %s21 = sphi 0, %s18
    %s22 = sphi 0, %s19
    %s23 = sphi 0, %s20
    %s24 = sphi 0, %s21
    %s25 = sphi 0, %s22
    %s41 = sphi 0, %s43
    %s44 = sphi 0, %s41
    %s45 = sphi 0, %s44
    %s61 = sphi 0, %s45
    %s73 = sphi 0, %s75
    %s76 = sphi 0, %s73
    %s77 = sphi 0, %s76
    %s93 = sphi 0, %s77
    %s99 = sphi 0, %s101
    %s102 = sphi 0, %s99
    %s103 = sphi 0, %s102
    %s119 = sphi 0, %s103
    %s125 = sphi 0, %s127
    %s128 = sphi 0, %s125
    %s129 = sphi 0, %s128
    %s145 = sphi 0, %s129
    %s155 = sphi 0, %s157
    %s158 = sphi 0, %s155
    %s159 = sphi 0, %s158
    %s175 = sphi 0, %s159
  $region4: #{tpu_custom_call.1} parent=0 // loop_header_branch
    %13 = sbr.rel (%p11) target = $region8
  $region5: #{tpu_custom_call.1} parent=0 // loop_body
    %s15 = ssub.s32 %s10, 1
    %s16 = ssub.s32 %s10, 2
    %s26 = sadd.s32 1, %s19
    %p27 = scmp.ge.s32.totalorder %s26, 1
    %s28 = scalar_select %p27, 0, %s26
    %s29 = sadd.s32 1, %s18
    %s30 = scalar_select %p27, %s29, %s18
    %p31 = scmp.ge.s32.totalorder %s30, 1
    %s32 = scalar_select %p31, 0, %s30
    %s33 = sadd.s32 1, %s17
    %s34 = scalar_select %p31, %s33, %s17
    %p35 = scmp.ge.s32.totalorder %s34, 2
    %s36 = scalar_select %p35, 0, %s34
    %s37 = ssub.s32 %s17, %s36
    %s38 = ssub.s32 %s18, %s32
    %s39 = sor.u32 %s37, %s38
    %p40 = scmp.eq.s32.totalorder %s39, 0
    %s42 = sadd.s32 %s41, 1
    %s43 = scalar_select %p40, %s41, %s42
    %p46 = pneg %p40
    %p47 = scmp.eq.s32.totalorder %s10, 1
    %p48 = por %p46, %p47
    %p49 = scmp.ne.s32.totalorder %s41, %s44
    %p50 = scmp.eq.s32.totalorder %s10, 0
    %p51 = por %p49, %p50
    %p52 = scmp.ne.s32.totalorder %s41, %s44
    %p53 = scmp.eq.s32.totalorder %s15, 1
    %p54 = por %p52, %p53
    %p55 = scmp.ne.s32.totalorder %s44, %s45
    %p56 = scmp.eq.s32.totalorder %s15, 0
    %p57 = por %p55, %p56
    %p58 = scmp.ne.s32.totalorder %s44, %s45
    %p59 = scmp.eq.s32.totalorder %s16, 1
    %p60 = por %p58, %p59
    %p62 = scmp.ne.s32.totalorder %s45, %s61
    %p63 = scmp.eq.s32.totalorder %s16, 0
    %p64 = por %p62, %p63
    %s65 = sadd.s32 %s18, 1
    %s66 = smul.u32 %s65, 2
    %s67 = sadd.s32 %s32, 1
    %s68 = smul.u32 %s67, 2
    %s69 = ssub.s32 %s17, %s36
    %s70 = ssub.s32 %s66, %s68
    %s71 = sor.u32 %s69, %s70
    %p72 = scmp.eq.s32.totalorder %s71, 0
    %s74 = sadd.s32 %s73, 1
    %s75 = scalar_select %p72, %s73, %s74
    %p78 = pneg %p72
    %p79 = scmp.eq.s32.totalorder %s10, 1
    %p80 = por %p78, %p79
    %p81 = scmp.ne.s32.totalorder %s73, %s76
    %p82 = scmp.eq.s32.totalorder %s10, 0
    %p83 = por %p81, %p82
    %p84 = scmp.ne.s32.totalorder %s73, %s76
    %p85 = scmp.eq.s32.totalorder %s15, 1
    %p86 = por %p84, %p85
    %p87 = scmp.ne.s32.totalorder %s76, %s77
    %p88 = scmp.eq.s32.totalorder %s15, 0
    %p89 = por %p87, %p88
    %p90 = scmp.ne.s32.totalorder %s76, %s77
    %p91 = scmp.eq.s32.totalorder %s16, 1
    %p92 = por %p90, %p91
    %p94 = scmp.ne.s32.totalorder %s77, %s93
    %p95 = scmp.eq.s32.totalorder %s16, 0
    %p96 = por %p94, %p95
    %s97 = ssub.s32 %s19, %s28
    %p98 = scmp.eq.s32.totalorder %s97, 0
    %s100 = sadd.s32 %s99, 1
    %s101 = scalar_select %p98, %s99, %s100
    %p104 = pneg %p98
    %p105 = scmp.eq.s32.totalorder %s10, 1
    %p106 = por %p104, %p105
    %p107 = scmp.ne.s32.totalorder %s99, %s102
    %p108 = scmp.eq.s32.totalorder %s10, 0
    %p109 = por %p107, %p108
    %p110 = scmp.ne.s32.totalorder %s99, %s102
    %p111 = scmp.eq.s32.totalorder %s15, 1
    %p112 = por %p110, %p111
    %p113 = scmp.ne.s32.totalorder %s102, %s103
    %p114 = scmp.eq.s32.totalorder %s15, 0
    %p115 = por %p113, %p114
    %p116 = scmp.ne.s32.totalorder %s102, %s103
    %p117 = scmp.eq.s32.totalorder %s16, 1
    %p118 = por %p116, %p117
    %p120 = scmp.ne.s32.totalorder %s103, %s119
    %p121 = scmp.eq.s32.totalorder %s16, 0
    %p122 = por %p120, %p121
    %s123 = ssub.s32 %s19, %s28
    %p124 = scmp.eq.s32.totalorder %s123, 0
    %s126 = sadd.s32 %s125, 1
    %s127 = scalar_select %p124, %s125, %s126
    %p130 = pneg %p124
    %p131 = scmp.eq.s32.totalorder %s10, 1
    %p132 = por %p130, %p131
    %p133 = scmp.ne.s32.totalorder %s125, %s128
    %p134 = scmp.eq.s32.totalorder %s10, 0
    %p135 = por %p133, %p134
    %p136 = scmp.ne.s32.totalorder %s125, %s128
    %p137 = scmp.eq.s32.totalorder %s15, 1
    %p138 = por %p136, %p137
    %p139 = scmp.ne.s32.totalorder %s128, %s129
    %p140 = scmp.eq.s32.totalorder %s15, 0
    %p141 = por %p139, %p140
    %p142 = scmp.ne.s32.totalorder %s128, %s129
    %p143 = scmp.eq.s32.totalorder %s16, 1
    %p144 = por %p142, %p143
    %p146 = scmp.ne.s32.totalorder %s129, %s145
    %p147 = scmp.eq.s32.totalorder %s16, 0
    %p148 = por %p146, %p147
    %s149 = ssub.s32 %s17, %s36
    %s150 = ssub.s32 %s18, %s32
    %s151 = sor.u32 %s149, %s150
    %s152 = ssub.s32 %s19, %s28
    %s153 = sor.u32 %s151, %s152
    %p154 = scmp.eq.s32.totalorder %s153, 0
    %s156 = sadd.s32 %s155, 1
    %s157 = scalar_select %p154, %s155, %s156
    %p160 = pneg %p154
    %p161 = scmp.eq.s32.totalorder %s10, 1
    %p162 = por %p160, %p161
    %p163 = scmp.ne.s32.totalorder %s155, %s158
    %p164 = scmp.eq.s32.totalorder %s10, 0
    %p165 = por %p163, %p164
    %p166 = scmp.ne.s32.totalorder %s155, %s158
    %p167 = scmp.eq.s32.totalorder %s15, 1
    %p168 = por %p166, %p167
    %p169 = scmp.ne.s32.totalorder %s158, %s159
    %p170 = scmp.eq.s32.totalorder %s15, 0
    %p171 = por %p169, %p170
    %p172 = scmp.ne.s32.totalorder %s158, %s159
    %p173 = scmp.eq.s32.totalorder %s16, 1
    %p174 = por %p172, %p173
    %p176 = scmp.ne.s32.totalorder %s159, %s175
    %p177 = scmp.eq.s32.totalorder %s16, 0
    %p178 = por %p176, %p177
    %p179 = scmp.le.s32.totalorder 1, %s10
    %p180 = scmp.lt.s32.totalorder %s10, 3
    %p181 = pnand %p179, %p180
    %p182 = pneg %p181
    // Predicated region
    $region9: #{tpu_custom_call.1} parent=5 // pred_check
      _
    $region10: #{tpu_custom_call.1} parent=5 // pred_check_branch
      %184 = sbr.rel (%p181) target = $region12
    $region11: #{tpu_custom_call.1} parent=5 // pred_region
      %s185 = ssub.s32 %s10, 1
      // Predicated region
      $region13: #{tpu_custom_call.1} parent=11 // pred_check
        %p186 = pneg %p115
      $region14: #{tpu_custom_call.1} parent=11 // pred_check_branch
        %188 = sbr.rel (%p186) target = $region16
      $region15: #{tpu_custom_call.1} parent=11 // pred_region
        %p189 = scmp.lt.s32.totalorder %s22, 0
        %s190 = scalar_select %p189, %s22, 0
        %s191 = smul.addr %s190, 4
        %s192 = scalar_lea.vmem %s2, %s191
      $region16: #{tpu_custom_call.1} parent=11 // pred_fallthru
        _
      // Predicated region
      $region17: #{tpu_custom_call.1} parent=11 // pred_check
        %p193 = pneg %p141
      $region18: #{tpu_custom_call.1} parent=11 // pred_check_branch
        %195 = sbr.rel (%p193) target = $region20
      $region19: #{tpu_custom_call.1} parent=11 // pred_region
        %p196 = scmp.lt.s32.totalorder %s22, 0
        %s197 = scalar_select %p196, %s22, 0
        %s198 = scalar_lea.vmem %s3, %s197
      $region20: #{tpu_custom_call.1} parent=11 // pred_fallthru
        _
    $region12: #{tpu_custom_call.1} parent=5 // pred_fallthru
      _
    %p199 = scmp.lt.s32.totalorder %s10, 2
    // Predicated region
    $region21: #{tpu_custom_call.1} parent=5 // pred_check
      %p200 = pneg %p199
    $region22: #{tpu_custom_call.1} parent=5 // pred_check_branch
      %202 = sbr.rel (%p200) target = $region24
    $region23: #{tpu_custom_call.1} parent=5 // pred_region
      // Predicated region
      $region25: #{tpu_custom_call.1} parent=23 // pred_check
        %p203 = pneg %p51
      $region26: #{tpu_custom_call.1} parent=23 // pred_check_branch
        %205 = sbr.rel (%p203) target = $region28
      $region27: #{tpu_custom_call.1} parent=23 // pred_region
        %s206 = smul.u32 2, %s18
        %s207 = ssub.s32 3, %s206
        %p208 = scmp.lt.s32.totalorder %s207, 2
        %s209 = scalar_select %p208, %s207, 2
        %s210 = smul.u32 8, %s209
        %p211 = scmp.lt.s32.totalorder %s17, 1
        %s212 = scalar_select %p211, %s17, 1
        %p213 = scmp.lt.s32.totalorder %s206, 2
        %s214 = scalar_select %p213, %s206, 2
        %s215 = smul.addr %s212, 3
        %s216 = sadd.s32 %s214, %s215
        %s217 = smul.addr %s216, 8
        %s218 = scalar_lea.vmem %s0, %s217
        %s219 = smul.u32 2, %s18
        %s220 = ssub.s32 3, %s219
        %p221 = scmp.lt.s32.totalorder %s220, 2
        %s222 = scalar_select %p221, %s220, 2
        %s223 = smul.u32 8, %s222
      $region28: #{tpu_custom_call.1} parent=23 // pred_fallthru
        _
      // Predicated region
      $region29: #{tpu_custom_call.1} parent=23 // pred_check
        %p224 = pneg %p83
      $region30: #{tpu_custom_call.1} parent=23 // pred_check_branch
        %226 = sbr.rel (%p224) target = $region32
      $region31: #{tpu_custom_call.1} parent=23 // pred_region
        %s227 = sadd.s32 %s18, 1
        %s228 = smul.u32 %s227, 2
        %p229 = scmp.lt.s32.totalorder %s17, 1
        %s230 = scalar_select %p229, %s17, 1
        %p231 = scmp.lt.s32.totalorder %s228, 2
        %s232 = scalar_select %p231, %s228, 2
        %s233 = smul.addr %s230, 3
        %s234 = sadd.s32 %s232, %s233
        %s235 = smul.addr %s234, 8
        %s236 = scalar_lea.vmem %s1, %s235
        %s237 = sadd.s32 %s18, 1
        %s238 = smul.u32 %s237, 2
      $region32: #{tpu_custom_call.1} parent=23 // pred_fallthru
        _
    $region24: #{tpu_custom_call.1} parent=5 // pred_fallthru
      _
    %p239 = scmp.le.s32.totalorder 1, %s10
    %p240 = scmp.lt.s32.totalorder %s10, 3
    %p241 = pnand %p239, %p240
    %p242 = pneg %p241
    // Predicated region
    $region33: #{tpu_custom_call.1} parent=5 // pred_check
      _
    $region34: #{tpu_custom_call.1} parent=5 // pred_check_branch
      %244 = sbr.rel (%p241) target = $region36
    $region35: #{tpu_custom_call.1} parent=5 // pred_region
      %s245 = ssub.s32 %s10, 1
      %s246 = smul.u32 2, %s21
      %s247 = ssub.s32 3, %s246
      %p248 = scmp.lt.s32.totalorder %s247, 2
      %s249 = scalar_select %p248, %s247, 2
      %s250 = smul.u32 8, %s249
      %p251 = scmp.lt.s32.totalorder %s20, 1
      %s252 = scalar_select %p251, %s20, 1
      %p253 = scmp.lt.s32.totalorder %s246, 2
      %s254 = scalar_select %p253, %s246, 2
      %s255 = smul.addr %s252, 3
      %s256 = sadd.s32 %s254, %s255
      %s257 = smul.addr %s256, 8
      %s258 = scalar_lea.vmem %s0, %s257
      %p259 = pneg %p57
      %p260 = pneg %p54
      %s261 = sadd.s32 %s21, 1
      %s262 = smul.u32 %s261, 2
      %p263 = scmp.lt.s32.totalorder %s20, 1
      %s264 = scalar_select %p263, %s20, 1
      %p265 = scmp.lt.s32.totalorder %s262, 2
      %s266 = scalar_select %p265, %s262, 2
      %s267 = smul.addr %s264, 3
      %s268 = sadd.s32 %s266, %s267
      %s269 = smul.addr %s268, 8
      %s270 = scalar_lea.vmem %s1, %s269
      %p271 = pneg %p89
      %p272 = pneg %p86
      %p273 = scmp.lt.s32.totalorder %s22, 0
      %s274 = scalar_select %p273, %s22, 0
      %s275 = smul.addr %s274, 4
      %s276 = scalar_lea.vmem %s2, %s275
      %p277 = pneg %p115
      %p278 = pneg %p112
      %p279 = scmp.lt.s32.totalorder %s22, 0
      %s280 = scalar_select %p279, %s22, 0
      %s281 = scalar_lea.vmem %s3, %s280
      %p282 = pneg %p141
      %p283 = pneg %p138
      %p284 = pneg %p171
      %p285 = pneg %p168
      %s286 = smul.u32 2, %s21
      %p287 = scmp.lt.s32.totalorder %s20, 1
      %s288 = scalar_select %p287, %s20, 1
      %p289 = scmp.lt.s32.totalorder %s286, 1
      %s290 = scalar_select %p289, %s286, 1
      %p291 = scmp.lt.s32.totalorder %s22, 0
      %s292 = scalar_select %p291, %s22, 0
      %s293 = sadd.s32 %s292, %s290
      %s294 = smul.addr %s288, 2
      %s295 = sadd.s32 %s293, %s294
      %s296 = smul.addr %s295, 8
      %s297 = scalar_lea.vmem %s4, %s296
      %s298 = smul.u32 2, %s21
      %s299 = ssub.s32 3, %s298
      %p300 = scmp.lt.s32.totalorder %s299, 2
      %s301 = scalar_select %p300, %s299, 2
      %s302 = smul.u32 8, %s301
      %p303 = scmp.lt.s32.totalorder %s20, 1
      %s304 = scalar_select %p303, %s20, 1
      %p305 = scmp.lt.s32.totalorder %s298, 2
      %s306 = scalar_select %p305, %s298, 2
      %s307 = smul.addr %s304, 3
      %s308 = sadd.s32 %s306, %s307
      %s309 = smul.addr %s308, 8
      %s310 = scalar_lea.vmem %s0, %s309
      %s311 = smul.u32 2, %s21
      %s312 = ssub.s32 3, %s311
      %p313 = scmp.lt.s32.totalorder %s312, 2
      %s314 = scalar_select %p313, %s312, 2
      %s315 = smul.u32 8, %s314
      %s316 = sadd.s32 %s21, 1
      %s317 = smul.u32 %s316, 2
      %p318 = scmp.lt.s32.totalorder %s20, 1
      %s319 = scalar_select %p318, %s20, 1
      %p320 = scmp.lt.s32.totalorder %s317, 2
      %s321 = scalar_select %p320, %s317, 2
      %s322 = smul.addr %s319, 3
      %s323 = sadd.s32 %s321, %s322
      %s324 = smul.addr %s323, 8
      %s325 = scalar_lea.vmem %s1, %s324
      %s326 = sadd.s32 %s21, 1
      %s327 = smul.u32 %s326, 2
      %p328 = scmp.lt.s32.totalorder %s22, 0
      %s329 = scalar_select %p328, %s22, 0
      %s330 = smul.addr %s329, 4
      %s331 = scalar_lea.vmem %s2, %s330
      %p332 = scmp.lt.s32.totalorder %s22, 0
      %s333 = scalar_select %p332, %s22, 0
      %s334 = scalar_lea.vmem %s3, %s333
      %s335 = smul.u32 2, %s21
      %p336 = scmp.lt.s32.totalorder %s20, 1
      %s337 = scalar_select %p336, %s20, 1
      %p338 = scmp.lt.s32.totalorder %s335, 1
      %s339 = scalar_select %p338, %s335, 1
      %p340 = scmp.lt.s32.totalorder %s22, 0
      %s341 = scalar_select %p340, %s22, 0
      %s342 = sadd.s32 %s341, %s339
      %s343 = smul.addr %s337, 2
      %s344 = sadd.s32 %s342, %s343
      %s345 = smul.addr %s344, 8
      %s346 = scalar_lea.vmem %s4, %s345
      %s347 = smul.u32 2, %s21
      %p348 = scmp.eq.s32.totalorder %s22, 0
      // Predicated region
      $region37: #{tpu_custom_call.1} parent=35 // pred_check
        %p349 = pneg %p348
      $region38: #{tpu_custom_call.1} parent=35 // pred_check_branch
        %351 = sbr.rel (%p349) target = $region40
      $region39: #{tpu_custom_call.1} parent=35 // pred_region
        %v352 = vld [vmem:[%s310] sm:$0xff]
        %v353 = vld [vmem:[%s310 + $0x8] sm:$0xff]
        %vm354 = vcmask 31744
        %355 = vst.msk [vmem:[#allocation2] sm:$0xff] %vm354, %v352
        %356 = vst.msk [vmem:[#allocation2 + $0x8] sm:$0xff] %vm354, %v353
        %v357 = vld [vmem:[%s325] sm:$0xff]
        %358 = vst.msk [vmem:[#allocation2 + $0x10] sm:$0xff] %vm354, %v357
      $region40: #{tpu_custom_call.1} parent=35 // pred_fallthru
        _
      %v359 = vld [vmem:[#allocation2] sm:$0xff]
      %v360 = vld [vmem:[#allocation2 + $0x8] sm:$0xff]
      %v361 = vld [vmem:[%s331] sm:$0xf]
      %v362 = vld [vmem:[#allocation2 + $0x1] sm:$0xff]
      %v363 = vld [vmem:[#allocation2 + $0x9] sm:$0xff]
      %s364 = scalar_lea.vmem %s331, 4
      %v365 = vld [vmem:[%s364] sm:$0xf]
      %vm366 = vcmask 31744
      %v368 = vsel %vm366, %v362, 0
      %v371 = vsel %vm366, %v363, 0
      %vm373 = vcmask 1043456
      %v375 = vsel %vm373, %v365, 0
      %377 = vmatpush.msra.mxu0 0.0
      %378 = vmatpush.msra.mxu0 0.0
      %379 = vmatpush.msra.mxu0 0.0
      %380 = vmatpush.msra.mxu0 0.0
      %381 = vmatpush.msra.mxu0 0.0
      %382 = vmatpush.msra.mxu0 0.0
      %383 = vmatpush.msra.mxu0 0.0
      %384 = vmatpush.msra.mxu0 0.0
      %385 = vmatpush.msra.mxu0 0.0
      %386 = vmatpush.msra.mxu0 0.0
      %387 = vmatpush.msra.mxu0 0.0
      %388 = vmatpush.msra.mxu0 0.0
      %389 = vmatpush.msra.mxu0 0.0
      %390 = vmatpush.msra.mxu0 0.0
      %391 = vmatpush.msra.mxu0 0.0
      %392 = vmatpush.msra.mxu0 %v375
      %393 = vmatmul.f32.gmra.mxu0 %v368
      %v394 = vpop.f32.mrf.mxu0
      %v395 = vadd.f32 0.0, %v394
      %396 = vmatmul.f32.gmra.mxu0 %v371
      %v397 = vpop.f32.mrf.mxu0
      %v398 = vadd.f32 0.0, %v397
      %399 = vdwg.mxu0
      %v401 = vsel %vm366, %v359, 0
      %v404 = vsel %vm366, %v360, 0
      %v407 = vsel %vm373, %v361, 0
      %409 = vmatpush.msra.mxu0 0.0
      %410 = vmatpush.msra.mxu0 0.0
      %411 = vmatpush.msra.mxu0 0.0
      %412 = vmatpush.msra.mxu0 0.0
      %413 = vmatpush.msra.mxu0 0.0
      %414 = vmatpush.msra.mxu0 0.0
      %415 = vmatpush.msra.mxu0 0.0
      %416 = vmatpush.msra.mxu0 0.0
      %417 = vmatpush.msra.mxu0 0.0
      %418 = vmatpush.msra.mxu0 0.0
      %419 = vmatpush.msra.mxu0 0.0
      %420 = vmatpush.msra.mxu0 0.0
      %421 = vmatpush.msra.mxu0 0.0
      %422 = vmatpush.msra.mxu0 0.0
      %423 = vmatpush.msra.mxu0 0.0
      %424 = vmatpush.msra.mxu0 %v407
      %425 = vmatmul.f32.gmra.mxu0 %v401
      %v426 = vpop.f32.mrf.mxu0
      %v427 = vadd.f32 %v395, %v426
      %428 = vmatmul.f32.gmra.mxu0 %v404
      %v429 = vpop.f32.mrf.mxu0
      %v430 = vadd.f32 %v398, %v429
      %431 = vdwg.mxu0
      %v432 = vld [vmem:[#allocation2 + $0x2] sm:$0xff]
      %v433 = vld [vmem:[#allocation2 + $0xa] sm:$0xff]
      %s434 = scalar_lea.vmem %s331, 8
      %v435 = vld [vmem:[%s434] sm:$0xf]
      %v437 = vsel %vm366, %v432, 0
      %v440 = vsel %vm366, %v433, 0
      %v443 = vsel %vm373, %v435, 0
      %445 = vmatpush.msra.mxu0 0.0
      %446 = vmatpush.msra.mxu0 0.0
      %447 = vmatpush.msra.mxu0 0.0
      %448 = vmatpush.msra.mxu0 0.0
      %449 = vmatpush.msra.mxu0 0.0
      %450 = vmatpush.msra.mxu0 0.0
      %451 = vmatpush.msra.mxu0 0.0
      %452 = vmatpush.msra.mxu0 0.0
      %453 = vmatpush.msra.mxu0 0.0
      %454 = vmatpush.msra.mxu0 0.0
      %455 = vmatpush.msra.mxu0 0.0
      %456 = vmatpush.msra.mxu0 0.0
      %457 = vmatpush.msra.mxu0 0.0
      %458 = vmatpush.msra.mxu0 0.0
      %459 = vmatpush.msra.mxu0 0.0
      %460 = vmatpush.msra.mxu0 %v443
      %461 = vmatmul.f32.gmra.mxu0 %v437
      %v462 = vpop.f32.mrf.mxu0
      %v463 = vadd.f32 0.0, %v462
      %464 = vmatmul.f32.gmra.mxu0 %v440
      %v465 = vpop.f32.mrf.mxu0
      %v466 = vadd.f32 0.0, %v465
      %467 = vdwg.mxu0
      %v468 = vadd.f32 %v427, %v463
      %v469 = vadd.f32 %v430, %v466
      %v470 = vld [vmem:[%s334] sm:$0x1]
      %v472 = vperm.slane %v470, 0
      %v474 = vadd.f32 %v468, %v472
      %v475 = vadd.f32 %v469, %v472
      %vm476 = vcmask 64512
      %477 = vst.msk [vmem:[%s346] sm:$0xff] %vm476, %v474
      %478 = vst.msk [vmem:[%s346 + $0x8] sm:$0xff] %vm476, %v475
      %s479 = smul.u32 2, %s21
      %p480 = scmp.lt.s32.totalorder %s20, 1
      %s481 = scalar_select %p480, %s20, 1
      %p482 = scmp.lt.s32.totalorder %s479, 1
      %s483 = scalar_select %p482, %s479, 1
      %p484 = scmp.lt.s32.totalorder %s22, 0
      %s485 = scalar_select %p484, %s22, 0
      %s486 = sadd.s32 %s485, %s483
      %s487 = smul.addr %s481, 2
      %s488 = sadd.s32 %s486, %s487
      %s489 = smul.addr %s488, 8
      %s490 = scalar_lea.vmem %s4, %s489
      // Predicated region
      $region41: #{tpu_custom_call.1} parent=35 // pred_check
        %p491 = pneg %p168
      $region42: #{tpu_custom_call.1} parent=35 // pred_check_branch
        %493 = sbr.rel (%p491) target = $region44
      $region43: #{tpu_custom_call.1} parent=35 // pred_region
        %s494 = smul.u32 2, %s21
      $region44: #{tpu_custom_call.1} parent=35 // pred_fallthru
        _
    $region36: #{tpu_custom_call.1} parent=5 // pred_fallthru
      _
    %p495 = scmp.le.s32.totalorder 2, %s10
    // Predicated region
    $region45: #{tpu_custom_call.1} parent=5 // pred_check
      %p496 = pneg %p495
    $region46: #{tpu_custom_call.1} parent=5 // pred_check_branch
      %498 = sbr.rel (%p496) target = $region48
    $region47: #{tpu_custom_call.1} parent=5 // pred_region
      %s499 = ssub.s32 %s10, 2
      // Predicated region
      $region49: #{tpu_custom_call.1} parent=47 // pred_check
        %p500 = pneg %p174
      $region50: #{tpu_custom_call.1} parent=47 // pred_check_branch
        %502 = sbr.rel (%p500) target = $region52
      $region51: #{tpu_custom_call.1} parent=47 // pred_region
        %s503 = smul.u32 2, %s24
        %p504 = scmp.lt.s32.totalorder %s23, 1
        %s505 = scalar_select %p504, %s23, 1
        %p506 = scmp.lt.s32.totalorder %s503, 1
        %s507 = scalar_select %p506, %s503, 1
        %p508 = scmp.lt.s32.totalorder %s25, 0
        %s509 = scalar_select %p508, %s25, 0
        %s510 = sadd.s32 %s509, %s507
        %s511 = smul.addr %s505, 2
        %s512 = sadd.s32 %s510, %s511
        %s513 = smul.addr %s512, 8
        %s514 = scalar_lea.vmem %s4, %s513
      $region52: #{tpu_custom_call.1} parent=47 // pred_fallthru
        _
    $region48: #{tpu_custom_call.1} parent=5 // pred_fallthru
      _
  $region6: #{tpu_custom_call.1} parent=0 // loop_footer
    %s14 = sadd.s32 1, %s10
  $region7: #{tpu_custom_call.1} parent=0 // loop_footer_branch
    %9 = sbr.rel target = $region3
  $region8: #{tpu_custom_call.1} parent=0 // loop_exit
    _

</llo_original>
